<compile_context>
chip_gen: v5e
topology: v5e:2x2
jax: 0.10.0
libtpu: 0.0.40
codegen_flags: <defaults>
</compile_context>

<pallas_src>
import functools

import jax
import jax.numpy as jnp
from jax.experimental import pallas as pl
from jax.experimental.pallas import tpu as pltpu

HIDDEN = 100          # hidden size of the PyTorch module
LANE = 128            # TPU lane width
TB_MAX = 2048         # max batch lanes per grid step


def _round_up(x, m):
    return (x + m - 1) // m * m


def _choose_tb(batch):
    """Batch-lane tile: lane-aligned, capped, and >=2 grid steps when batch > 128."""
    if batch <= LANE:
        return batch                                   # single tile (== full dim)
    half = -(-batch // 2)                              # cdiv(batch, 2)
    return min(TB_MAX, _round_up(half, LANE))          # multiple of 128


def critic_kernel(xT_ref, w1T_ref, b1_ref, w2_ref, b2_ref, o_ref):
    n_state = xT_ref.shape[0]      # tiny contraction dim (static)
    tb = xT_ref.shape[1]           # batch lanes in this tile (static)
    hid = w1T_ref.shape[0]         # 128 (zero-padded past 100)

    if n_state >= 16:
        # Contraction large enough to be worth the MXU: (hid,K) @ (K,tb).
        h = jnp.dot(w1T_ref[...], xT_ref[...],
                    preferred_element_type=jnp.float32) + b1_ref[...]
    else:
        # Tiny K (CartPole: 4): unrolled broadcast-FMA on the VPU, start from bias.
        h = jnp.broadcast_to(b1_ref[...], (hid, tb))
        for k in range(n_state):                        # static unroll
            h = h + w1T_ref[:, k:k + 1] * xT_ref[k:k + 1, :]

    h = jnp.maximum(h, 0.0)                             # ReLU

    # Second layer (hid -> 1): VPU multiply + sublane (XLU) reduction.  Padded
    # sublanes of h and w2 are zero -> exact.  Result is lane-dense (1, tb).
    v = jnp.sum(h * w2_ref[...], axis=0, keepdims=True) + b2_ref[0]
    o_ref[...] = v.astype(o_ref.dtype)


def prepare_params(w1, b1, w2, b2):
    """Host-side, once: transpose to (hid, ...) layout and zero-pad hid 100 -> 128.

    The zero padding is load-bearing: padded w1^T/b1 rows give h == 0 there and
    padded w2 rows multiply by 0, so the layer-2 reduction is exact.
    """
    n_state, hid = w1.shape
    hid_p = _round_up(hid, LANE)
    pad = hid_p - hid
    w1T = jnp.pad(w1.T, ((0, pad), (0, 0))).astype(jnp.float32)            # (128, n_state)
    b1p = jnp.pad(b1.reshape(hid, 1), ((0, pad), (0, 0))).astype(jnp.float32)  # (128, 1)
    w2p = jnp.pad(w2.reshape(hid, 1), ((0, pad), (0, 0))).astype(jnp.float32)  # (128, 1)
    b2p = b2.reshape(1).astype(jnp.float32)                                # (1,) -> SMEM
    return w1T, b1p, w2p, b2p


@functools.partial(jax.jit, static_argnames=("tb",))
def critic_forward(x, w1T, b1p, w2p, b2p, *, tb=None):
    batch, n_state = x.shape
    hid_p = w1T.shape[0]

    if tb is None:
        tb = _choose_tb(batch)
    grid = (pl.cdiv(batch, tb),)

    xT = x.T                                            # (n_state, batch), lane-dense rows

    cost = pl.CostEstimate(
        flops=2 * batch * n_state * HIDDEN + 2 * batch * HIDDEN,
        transcendentals=0,
        bytes_accessed=4 * (batch * n_state + batch
                            + hid_p * n_state + 2 * hid_p + 1),
    )

    out = pl.pallas_call(
        critic_kernel,
        out_shape=jax.ShapeDtypeStruct((1, batch), jnp.float32),
        grid=grid,
        in_specs=[
            pl.BlockSpec((n_state, tb), lambda i: (0, i)),      # x^T: tiled over batch lanes
            pl.BlockSpec((hid_p, n_state), lambda i: (0, 0)),   # w1^T: VMEM-resident
            pl.BlockSpec((hid_p, 1), lambda i: (0, 0)),         # b1: VMEM-resident
            pl.BlockSpec((hid_p, 1), lambda i: (0, 0)),         # w2: VMEM-resident
            pl.BlockSpec(memory_space=pltpu.MemorySpace.SMEM),  # b2: scalar in SMEM
        ],
        out_specs=pl.BlockSpec((1, tb), lambda i: (0, i)),      # compact lane-dense output
        compiler_params=pltpu.CompilerParams(
            dimension_semantics=("parallel",),                  # megacore split on v7x
        ),
        cost_estimate=cost,
    )(xT, w1T, b1p, w2p, b2p)

    return out.reshape(batch, 1)                                # (1,B) -> (B,1), no data move


def init_params(key, n_state, hidden=HIDDEN):
    # Deterministic synthetic init (PyTorch-style uniform bounds, not a checkpoint).
    k1, k2, k3, k4 = jax.random.split(key, 4)
    bound1 = 1.0 / jnp.sqrt(n_state)
    bound2 = 1.0 / jnp.sqrt(hidden)
    w1 = jax.random.uniform(k1, (n_state, hidden), jnp.float32, -bound1, bound1)
    b1 = jax.random.uniform(k2, (1, hidden), jnp.float32, -bound1, bound1)
    w2 = jax.random.uniform(k3, (hidden, 1), jnp.float32, -bound2, bound2)
    b2 = jax.random.uniform(k4, (1, 1), jnp.float32, -bound2, bound2)
    return w1, b1, w2, b2


if __name__ == "__main__":
    n_state = 4      # CartPole observation size
    n_action = 2     # unused by Critic forward (kept for signature parity)

    key = jax.random.PRNGKey(0)
    k_x1, k_x2, k_p = jax.random.split(key, 3)
    w1, b1, w2, b2 = init_params(k_p, n_state)
    params = prepare_params(w1, b1, w2, b2)   # transpose + pad once, host side

    def ref_fn(x):
        return jnp.maximum(x @ w1 + b1, 0.0) @ w2 + b2

    # Small single-tile case.
    x_small = jax.random.normal(k_x1, (8, n_state), jnp.float32)
    out_small = jax.block_until_ready(critic_forward(x_small, *params))
    assert out_small.shape == (8, 1)
    assert jnp.allclose(out_small, ref_fn(x_small), atol=1e-5, rtol=1e-5)

    # Multi-step grid with a partial last batch tile (exercises masked writeback).
    x_big = jax.random.normal(k_x2, (260, n_state), jnp.float32)
    out_big = jax.block_until_ready(critic_forward(x_big, *params))
    assert out_big.shape == (260, 1)
    assert jnp.allclose(out_big, ref_fn(x_big), atol=1e-5, rtol=1e-5)

    print("KERNEL_OK")
</pallas_src>

<mosaic_0001>
module attributes {stable_mosaic.version = 11 : i64} {
  func.func @critic_kernel(%arg0: i32, %arg1: memref<4x8xf32, #tpu.memory_space<vmem>>, %arg2: memref<128x4xf32, #tpu.memory_space<vmem>>, %arg3: memref<128x1xf32, #tpu.memory_space<vmem>>, %arg4: memref<128x1xf32, #tpu.memory_space<vmem>>, %arg5: memref<1xf32, #tpu.memory_space<smem>>, %arg6: memref<1x8xf32, #tpu.memory_space<vmem>>) attributes {dimension_semantics = [#tpu.dimension_semantics<parallel>], iteration_bounds = array<i64: 1>, scalar_prefetch = 0 : i64, scratch_operands = 0 : i64, tpu.core_type = #tpu.core_type<tc>, window_params = [{transform_indices = @transform_0, window_bounds = array<i64: 4, 8>}, {pipeline_mode = #tpu.pipeline_mode<synchronous>, transform_indices = @transform_1, window_bounds = array<i64: 128, 4>}, {pipeline_mode = #tpu.pipeline_mode<synchronous>, transform_indices = @transform_2, window_bounds = array<i64: 128, 1>}, {pipeline_mode = #tpu.pipeline_mode<synchronous>, transform_indices = @transform_3, window_bounds = array<i64: 128, 1>}, {transform_indices = @transform_4, window_bounds = array<i64: 1>}, {transform_indices = @transform_5, window_bounds = array<i64: 1, 8>}]} {
    %c0 = arith.constant 0 : index
    %c0_0 = arith.constant 0 : index
    %0 = vector.load %arg3[%c0, %c0_0] : memref<128x1xf32, #tpu.memory_space<vmem>>, vector<128x1xf32>
    %1 = vector.shape_cast %0 : vector<128x1xf32> to vector<128x1xf32>
    %2 = vector.broadcast %1 : vector<128x1xf32> to vector<128x8xf32>
    %c0_1 = arith.constant 0 : index
    %c0_2 = arith.constant 0 : index
    %3 = vector.load %arg2[%c0_1, %c0_2] : memref<128x4xf32, #tpu.memory_space<vmem>>, vector<128x1xf32>
    %c0_3 = arith.constant 0 : index
    %c0_4 = arith.constant 0 : index
    %4 = vector.load %arg1[%c0_3, %c0_4] : memref<4x8xf32, #tpu.memory_space<vmem>>, vector<1x8xf32>
    %5 = vector.broadcast %3 : vector<128x1xf32> to vector<128x8xf32>
    %6 = vector.broadcast %4 : vector<1x8xf32> to vector<128x8xf32>
    %7 = arith.mulf %5, %6 : vector<128x8xf32>
    %8 = arith.addf %2, %7 : vector<128x8xf32>
    %c0_5 = arith.constant 0 : index
    %c1 = arith.constant 1 : index
    %9 = vector.load %arg2[%c0_5, %c1] : memref<128x4xf32, #tpu.memory_space<vmem>>, vector<128x1xf32>
    %c1_6 = arith.constant 1 : index
    %c0_7 = arith.constant 0 : index
    %10 = vector.load %arg1[%c1_6, %c0_7] : memref<4x8xf32, #tpu.memory_space<vmem>>, vector<1x8xf32>
    %11 = vector.broadcast %9 : vector<128x1xf32> to vector<128x8xf32>
    %12 = vector.broadcast %10 : vector<1x8xf32> to vector<128x8xf32>
    %13 = arith.mulf %11, %12 : vector<128x8xf32>
    %14 = arith.addf %8, %13 : vector<128x8xf32>
    %c0_8 = arith.constant 0 : index
    %c2 = arith.constant 2 : index
    %15 = vector.load %arg2[%c0_8, %c2] : memref<128x4xf32, #tpu.memory_space<vmem>>, vector<128x1xf32>
    %c2_9 = arith.constant 2 : index
    %c0_10 = arith.constant 0 : index
    %16 = vector.load %arg1[%c2_9, %c0_10] : memref<4x8xf32, #tpu.memory_space<vmem>>, vector<1x8xf32>
    %17 = vector.broadcast %15 : vector<128x1xf32> to vector<128x8xf32>
    %18 = vector.broadcast %16 : vector<1x8xf32> to vector<128x8xf32>
    %19 = arith.mulf %17, %18 : vector<128x8xf32>
    %20 = arith.addf %14, %19 : vector<128x8xf32>
    %c0_11 = arith.constant 0 : index
    %c3 = arith.constant 3 : index
    %21 = vector.load %arg2[%c0_11, %c3] : memref<128x4xf32, #tpu.memory_space<vmem>>, vector<128x1xf32>
    %c3_12 = arith.constant 3 : index
    %c0_13 = arith.constant 0 : index
    %22 = vector.load %arg1[%c3_12, %c0_13] : memref<4x8xf32, #tpu.memory_space<vmem>>, vector<1x8xf32>
    %23 = vector.broadcast %21 : vector<128x1xf32> to vector<128x8xf32>
    %24 = vector.broadcast %22 : vector<1x8xf32> to vector<128x8xf32>
    %25 = arith.mulf %23, %24 : vector<128x8xf32>
    %26 = arith.addf %20, %25 : vector<128x8xf32>
    %cst = arith.constant 0.000000e+00 : f32
    %27 = vector.broadcast %cst : f32 to vector<128x8xf32>
    %28 = arith.maximumf %26, %27 : vector<128x8xf32>
    %c0_14 = arith.constant 0 : index
    %c0_15 = arith.constant 0 : index
    %29 = vector.load %arg4[%c0_14, %c0_15] : memref<128x1xf32, #tpu.memory_space<vmem>>, vector<128x1xf32>
    %30 = vector.broadcast %29 : vector<128x1xf32> to vector<128x8xf32>
    %31 = arith.mulf %28, %30 : vector<128x8xf32>
    %cst_16 = arith.constant dense<0.000000e+00> : vector<8xf32>
    %32 = vector.multi_reduction <add>, %31, %cst_16 [0] : vector<128x8xf32> to vector<8xf32>
    %33 = vector.shape_cast %32 : vector<8xf32> to vector<1x8xf32>
    %c0_17 = arith.constant 0 : index
    %34 = memref.load %arg5[%c0_17] : memref<1xf32, #tpu.memory_space<smem>>
    %35 = vector.broadcast %34 : f32 to vector<1x8xf32>
    %36 = arith.addf %33, %35 : vector<1x8xf32>
    %c0_18 = arith.constant 0 : index
    %c0_19 = arith.constant 0 : index
    %37 = vector.load %arg6[%c0_18, %c0_19] : memref<1x8xf32, #tpu.memory_space<vmem>>, vector<1x8xf32>
    tpu.vector_store %arg6[%c0_18, %c0_19], %36 {strides = array<i32>} : memref<1x8xf32, #tpu.memory_space<vmem>>, vector<1x8xf32>,
    return
  }
  func.func @transform_0(%arg0: i32) -> (i32, i32) {
    %c0_i32 = arith.constant 0 : i32
    %c0_i32_0 = arith.constant 0 : i32
    return %c0_i32, %arg0 : i32, i32
  }
  func.func @transform_1(%arg0: i32) -> (i32, i32) {
    %c0_i32 = arith.constant 0 : i32
    %c0_i32_0 = arith.constant 0 : i32
    %c0_i32_1 = arith.constant 0 : i32
    return %c0_i32, %c0_i32_0 : i32, i32
  }
  func.func @transform_2(%arg0: i32) -> (i32, i32) {
    %c0_i32 = arith.constant 0 : i32
    %c0_i32_0 = arith.constant 0 : i32
    %c0_i32_1 = arith.constant 0 : i32
    return %c0_i32, %c0_i32_0 : i32, i32
  }
  func.func @transform_3(%arg0: i32) -> (i32, i32) {
    %c0_i32 = arith.constant 0 : i32
    %c0_i32_0 = arith.constant 0 : i32
    %c0_i32_1 = arith.constant 0 : i32
    return %c0_i32, %c0_i32_0 : i32, i32
  }
  func.func @transform_4(%arg0: i32) -> i32 {
    %c0_i32 = arith.constant 0 : i32
    %c0_i32_0 = arith.constant 0 : i32
    return %c0_i32 : i32
  }
  func.func @transform_5(%arg0: i32) -> (i32, i32) {
    %c0_i32 = arith.constant 0 : i32
    %c0_i32_0 = arith.constant 0 : i32
    return %c0_i32, %arg0 : i32, i32
  }
}

</mosaic_0001>

<llo_original>
// kernel: critic_forward.1
$region0: #{critic_forward.1}
  #allocation0 [shape = 'u32[]', space=smem, size = 0x4, offset = 0x4, fixed_abs, tag = 'smem constant byte address 0x4 - core index']
  #allocation1 [shape = 'u32[72,128]{1,0:T(1,128)}', space=vmem, size = 0x9000, scoped, tag = 'internal scratch']
  #allocation2 [shape = 'f32[1]{0:T(128)S(6)}', space=smem, size = 0x200, scoped, tag = 'scoped memory for critic_forward.1']
  %s0 = inlined_call_operand.vmem [shape: f32[4,8], index: 0, kind: input, shape index: {}]
  %s1 = inlined_call_operand.vmem [shape: f32[128,4], index: 1, kind: input, shape index: {}]
  %s2 = inlined_call_operand.vmem [shape: f32[128,1], index: 2, kind: input, shape index: {}]
  %s3 = inlined_call_operand.vmem [shape: f32[128,1], index: 3, kind: input, shape index: {}]
  %s4 = inlined_call_operand.<no memory space> [shape: f32[1], index: 4, kind: input, shape index: {}]
  %s5 = inlined_call_operand.hbm [shape: f32[1,8], index: 5, kind: output, shape index: {}]
  %s6 = sld [smem:[#allocation0]]
  $region30: #{critic_forward.1} parent=0
    _
  %s8 = ssub.s32 1, %s6
  %s9 = scalar_select 0, %s8, %s6
  %10 = sst [smem:[#allocation2]] %s4
  $region1: #{critic_forward.1} parent=0
    #allocation3 [shape = 'u8[512]{0}', space=vmem, size = 0x400, scoped, tag = 'output window, operand 0, single buffered']
    #allocation4 [shape = 's32[1]{0}', space=sflag, size = 0x4, scoped, tag = 'scoped memory for critic_forward.1']
    %11 = vsyncpa [#allocation4], 0
    // Predicated region
    $region2: #{critic_forward.1} parent=1 // pred_check
      _
    $region3: #{critic_forward.1} parent=1 // pred_check_branch
      %13 = sbr.rel (0) target = $region5
    $region4: #{critic_forward.1} parent=1 // pred_region
      _
    $region5: #{critic_forward.1} parent=1 // pred_fallthru
      _
    // Predicated region
    $region6: #{critic_forward.1} parent=1 // pred_check
      _
    $region7: #{critic_forward.1} parent=1 // pred_check_branch
      %15 = sbr.rel (0) target = $region9
    $region8: #{critic_forward.1} parent=1 // pred_region
      _
    $region9: #{critic_forward.1} parent=1 // pred_fallthru
      _
    // Predicated region
    $region10: #{critic_forward.1} parent=1 // pred_check
      _
    $region11: #{critic_forward.1} parent=1 // pred_check_branch
      %17 = sbr.rel (0) target = $region13
    $region12: #{critic_forward.1} parent=1 // pred_region
      _
    $region13: #{critic_forward.1} parent=1 // pred_fallthru
      _
    // Predicated region
    $region14: #{critic_forward.1} parent=1 // pred_check
      _
    $region15: #{critic_forward.1} parent=1 // pred_check_branch
      %19 = sbr.rel (0) target = $region17
    $region16: #{critic_forward.1} parent=1 // pred_region
      _
    $region17: #{critic_forward.1} parent=1 // pred_fallthru
      _
    // Predicated region
    $region18: #{critic_forward.1} parent=1 // pred_check
      _
    $region19: #{critic_forward.1} parent=1 // pred_check_branch
      %21 = sbr.rel (0) target = $region21
    $region20: #{critic_forward.1} parent=1 // pred_region
      _
    $region21: #{critic_forward.1} parent=1 // pred_fallthru
      _
    %v22 = vld [vmem:[%s2] sm:$0xff]
    %v23 = vld [vmem:[%s2 + $0x8] sm:$0xff]
    %v24 = vld [vmem:[%s2 + $0x10] sm:$0xff]
    %v25 = vld [vmem:[%s2 + $0x18] sm:$0xff]
    %v26 = vld [vmem:[%s2 + $0x20] sm:$0xff]
    %v27 = vld [vmem:[%s2 + $0x28] sm:$0xff]
    %v28 = vld [vmem:[%s2 + $0x30] sm:$0xff]
    %v29 = vld [vmem:[%s2 + $0x38] sm:$0xff]
    %v30 = vld [vmem:[%s2 + $0x40] sm:$0xff]
    %v31 = vld [vmem:[%s2 + $0x48] sm:$0xff]
    %v32 = vld [vmem:[%s2 + $0x50] sm:$0xff]
    %v33 = vld [vmem:[%s2 + $0x58] sm:$0xff]
    %v34 = vld [vmem:[%s2 + $0x60] sm:$0xff]
    %v35 = vld [vmem:[%s2 + $0x68] sm:$0xff]
    %v36 = vld [vmem:[%s2 + $0x70] sm:$0xff]
    %v37 = vld [vmem:[%s2 + $0x78] sm:$0xff]
    %39 = vset.pattern.permute.xlu0 0
    %40 = vperm.xlu0 %39, %v22
    %v41 = vpop.permute.xlu0 %40
    %44 = vset.pattern.permute.xlu0 0
    %45 = vperm.xlu0 %44, %v23
    %v46 = vpop.permute.xlu0 %45
    %49 = vset.pattern.permute.xlu0 0
    %50 = vperm.xlu0 %49, %v24
    %v51 = vpop.permute.xlu0 %50
    %54 = vset.pattern.permute.xlu0 0
    %55 = vperm.xlu0 %54, %v25
    %v56 = vpop.permute.xlu0 %55
    %59 = vset.pattern.permute.xlu0 0
    %60 = vperm.xlu0 %59, %v26
    %v61 = vpop.permute.xlu0 %60
    %64 = vset.pattern.permute.xlu0 0
    %65 = vperm.xlu0 %64, %v27
    %v66 = vpop.permute.xlu0 %65
    %69 = vset.pattern.permute.xlu0 0
    %70 = vperm.xlu0 %69, %v28
    %v71 = vpop.permute.xlu0 %70
    %74 = vset.pattern.permute.xlu0 0
    %75 = vperm.xlu0 %74, %v29
    %v76 = vpop.permute.xlu0 %75
    %79 = vset.pattern.permute.xlu0 0
    %80 = vperm.xlu0 %79, %v30
    %v81 = vpop.permute.xlu0 %80
    %84 = vset.pattern.permute.xlu0 0
    %85 = vperm.xlu0 %84, %v31
    %v86 = vpop.permute.xlu0 %85
    %89 = vset.pattern.permute.xlu0 0
    %90 = vperm.xlu0 %89, %v32
    %v91 = vpop.permute.xlu0 %90
    %94 = vset.pattern.permute.xlu0 0
    %95 = vperm.xlu0 %94, %v33
    %v96 = vpop.permute.xlu0 %95
    %99 = vset.pattern.permute.xlu0 0
    %100 = vperm.xlu0 %99, %v34
    %v101 = vpop.permute.xlu0 %100
    %104 = vset.pattern.permute.xlu0 0
    %105 = vperm.xlu0 %104, %v35
    %v106 = vpop.permute.xlu0 %105
    %109 = vset.pattern.permute.xlu0 0
    %110 = vperm.xlu0 %109, %v36
    %v111 = vpop.permute.xlu0 %110
    %114 = vset.pattern.permute.xlu0 0
    %115 = vperm.xlu0 %114, %v37
    %v116 = vpop.permute.xlu0 %115
    %v118 = vld [vmem:[%s1] sm:$0xff]
    %v119 = vld [vmem:[%s1 + $0x8] sm:$0xff]
    %v120 = vld [vmem:[%s1 + $0x10] sm:$0xff]
    %v121 = vld [vmem:[%s1 + $0x18] sm:$0xff]
    %v122 = vld [vmem:[%s1 + $0x20] sm:$0xff]
    %v123 = vld [vmem:[%s1 + $0x28] sm:$0xff]
    %v124 = vld [vmem:[%s1 + $0x30] sm:$0xff]
    %v125 = vld [vmem:[%s1 + $0x38] sm:$0xff]
    %v126 = vld [vmem:[%s1 + $0x40] sm:$0xff]
    %v127 = vld [vmem:[%s1 + $0x48] sm:$0xff]
    %v128 = vld [vmem:[%s1 + $0x50] sm:$0xff]
    %v129 = vld [vmem:[%s1 + $0x58] sm:$0xff]
    %v130 = vld [vmem:[%s1 + $0x60] sm:$0xff]
    %v131 = vld [vmem:[%s1 + $0x68] sm:$0xff]
    %v132 = vld [vmem:[%s1 + $0x70] sm:$0xff]
    %v133 = vld [vmem:[%s1 + $0x78] sm:$0xff]
    %v134 = vld [vmem:[%s0] sm:$0x1]
    %136 = vset.pattern.permute.xlu0 0
    %137 = vperm.xlu0 %136, %v118
    %v138 = vpop.permute.xlu0 %137
    %141 = vset.pattern.permute.xlu0 0
    %142 = vperm.xlu0 %141, %v119
    %v143 = vpop.permute.xlu0 %142
    %146 = vset.pattern.permute.xlu0 0
    %147 = vperm.xlu0 %146, %v120
    %v148 = vpop.permute.xlu0 %147
    %151 = vset.pattern.permute.xlu0 0
    %152 = vperm.xlu0 %151, %v121
    %v153 = vpop.permute.xlu0 %152
    %156 = vset.pattern.permute.xlu0 0
    %157 = vperm.xlu0 %156, %v122
    %v158 = vpop.permute.xlu0 %157
    %161 = vset.pattern.permute.xlu0 0
    %162 = vperm.xlu0 %161, %v123
    %v163 = vpop.permute.xlu0 %162
    %166 = vset.pattern.permute.xlu0 0
    %167 = vperm.xlu0 %166, %v124
    %v168 = vpop.permute.xlu0 %167
    %171 = vset.pattern.permute.xlu0 0
    %172 = vperm.xlu0 %171, %v125
    %v173 = vpop.permute.xlu0 %172
    %176 = vset.pattern.permute.xlu0 0
    %177 = vperm.xlu0 %176, %v126
    %v178 = vpop.permute.xlu0 %177
    %181 = vset.pattern.permute.xlu0 0
    %182 = vperm.xlu0 %181, %v127
    %v183 = vpop.permute.xlu0 %182
    %186 = vset.pattern.permute.xlu0 0
    %187 = vperm.xlu0 %186, %v128
    %v188 = vpop.permute.xlu0 %187
    %191 = vset.pattern.permute.xlu0 0
    %192 = vperm.xlu0 %191, %v129
    %v193 = vpop.permute.xlu0 %192
    %196 = vset.pattern.permute.xlu0 0
    %197 = vperm.xlu0 %196, %v130
    %v198 = vpop.permute.xlu0 %197
    %201 = vset.pattern.permute.xlu0 0
    %202 = vperm.xlu0 %201, %v131
    %v203 = vpop.permute.xlu0 %202
    %206 = vset.pattern.permute.xlu0 0
    %207 = vperm.xlu0 %206, %v132
    %v208 = vpop.permute.xlu0 %207
    %211 = vset.pattern.permute.xlu0 0
    %212 = vperm.xlu0 %211, %v133
    %v213 = vpop.permute.xlu0 %212
    %v215 = vperm.slane %v134, 0
    %v216 = vmul.f32 %v138, %v215
    %v217 = vmul.f32 %v143, %v215
    %v218 = vmul.f32 %v148, %v215
    %v219 = vmul.f32 %v153, %v215
    %v220 = vmul.f32 %v158, %v215
    %v221 = vmul.f32 %v163, %v215
    %v222 = vmul.f32 %v168, %v215
    %v223 = vmul.f32 %v173, %v215
    %v224 = vmul.f32 %v178, %v215
    %v225 = vmul.f32 %v183, %v215
    %v226 = vmul.f32 %v188, %v215
    %v227 = vmul.f32 %v193, %v215
    %v228 = vmul.f32 %v198, %v215
    %v229 = vmul.f32 %v203, %v215
    %v230 = vmul.f32 %v208, %v215
    %v231 = vmul.f32 %v213, %v215
    %v232 = vadd.f32 %v41, %v216
    %v233 = vadd.f32 %v46, %v217
    %v234 = vadd.f32 %v51, %v218
    %v235 = vadd.f32 %v56, %v219
    %v236 = vadd.f32 %v61, %v220
    %v237 = vadd.f32 %v66, %v221
    %v238 = vadd.f32 %v71, %v222
    %v239 = vadd.f32 %v76, %v223
    %v240 = vadd.f32 %v81, %v224
    %v241 = vadd.f32 %v86, %v225
    %v242 = vadd.f32 %v91, %v226
    %v243 = vadd.f32 %v96, %v227
    %v244 = vadd.f32 %v101, %v228
    %v245 = vadd.f32 %v106, %v229
    %v246 = vadd.f32 %v111, %v230
    %v247 = vadd.f32 %v116, %v231
    %v248 = vld [vmem:[%s0 + $0x1] sm:$0x1]
    %249 = vset.pattern.permute.xlu0 1
    %250 = vperm.xlu0 %249, %v118
    %v251 = vpop.permute.xlu0 %250
    %253 = vset.pattern.permute.xlu0 1
    %254 = vperm.xlu0 %253, %v119
    %v255 = vpop.permute.xlu0 %254
    %257 = vset.pattern.permute.xlu0 1
    %258 = vperm.xlu0 %257, %v120
    %v259 = vpop.permute.xlu0 %258
    %261 = vset.pattern.permute.xlu0 1
    %262 = vperm.xlu0 %261, %v121
    %v263 = vpop.permute.xlu0 %262
    %265 = vset.pattern.permute.xlu0 1
    %266 = vperm.xlu0 %265, %v122
    %v267 = vpop.permute.xlu0 %266
    %269 = vset.pattern.permute.xlu0 1
    %270 = vperm.xlu0 %269, %v123
    %v271 = vpop.permute.xlu0 %270
    %273 = vset.pattern.permute.xlu0 1
    %274 = vperm.xlu0 %273, %v124
    %v275 = vpop.permute.xlu0 %274
    %277 = vset.pattern.permute.xlu0 1
    %278 = vperm.xlu0 %277, %v125
    %v279 = vpop.permute.xlu0 %278
    %281 = vset.pattern.permute.xlu0 1
    %282 = vperm.xlu0 %281, %v126
    %v283 = vpop.permute.xlu0 %282
    %285 = vset.pattern.permute.xlu0 1
    %286 = vperm.xlu0 %285, %v127
    %v287 = vpop.permute.xlu0 %286
    %289 = vset.pattern.permute.xlu0 1
    %290 = vperm.xlu0 %289, %v128
    %v291 = vpop.permute.xlu0 %290
    %293 = vset.pattern.permute.xlu0 1
    %294 = vperm.xlu0 %293, %v129
    %v295 = vpop.permute.xlu0 %294
    %297 = vset.pattern.permute.xlu0 1
    %298 = vperm.xlu0 %297, %v130
    %v299 = vpop.permute.xlu0 %298
    %301 = vset.pattern.permute.xlu0 1
    %302 = vperm.xlu0 %301, %v131
    %v303 = vpop.permute.xlu0 %302
    %305 = vset.pattern.permute.xlu0 1
    %306 = vperm.xlu0 %305, %v132
    %v307 = vpop.permute.xlu0 %306
    %309 = vset.pattern.permute.xlu0 1
    %310 = vperm.xlu0 %309, %v133
    %v311 = vpop.permute.xlu0 %310
    %v313 = vperm.slane %v248, 0
    %v314 = vmul.f32 %v251, %v313
    %v315 = vmul.f32 %v255, %v313
    %v316 = vmul.f32 %v259, %v313
    %v317 = vmul.f32 %v263, %v313
    %v318 = vmul.f32 %v267, %v313
    %v319 = vmul.f32 %v271, %v313
    %v320 = vmul.f32 %v275, %v313
    %v321 = vmul.f32 %v279, %v313
    %v322 = vmul.f32 %v283, %v313
    %v323 = vmul.f32 %v287, %v313
    %v324 = vmul.f32 %v291, %v313
    %v325 = vmul.f32 %v295, %v313
    %v326 = vmul.f32 %v299, %v313
    %v327 = vmul.f32 %v303, %v313
    %v328 = vmul.f32 %v307, %v313
    %v329 = vmul.f32 %v311, %v313
    %v330 = vadd.f32 %v232, %v314
    %v331 = vadd.f32 %v233, %v315
    %v332 = vadd.f32 %v234, %v316
    %v333 = vadd.f32 %v235, %v317
    %v334 = vadd.f32 %v236, %v318
    %v335 = vadd.f32 %v237, %v319
    %v336 = vadd.f32 %v238, %v320
    %v337 = vadd.f32 %v239, %v321
    %v338 = vadd.f32 %v240, %v322
    %v339 = vadd.f32 %v241, %v323
    %v340 = vadd.f32 %v242, %v324
    %v341 = vadd.f32 %v243, %v325
    %v342 = vadd.f32 %v244, %v326
    %v343 = vadd.f32 %v245, %v327
    %v344 = vadd.f32 %v246, %v328
    %v345 = vadd.f32 %v247, %v329
    %v346 = vld [vmem:[%s0 + $0x2] sm:$0x1]
    %347 = vset.pattern.permute.xlu0 2
    %348 = vperm.xlu0 %347, %v118
    %v349 = vpop.permute.xlu0 %348
    %351 = vset.pattern.permute.xlu0 2
    %352 = vperm.xlu0 %351, %v119
    %v353 = vpop.permute.xlu0 %352
    %355 = vset.pattern.permute.xlu0 2
    %356 = vperm.xlu0 %355, %v120
    %v357 = vpop.permute.xlu0 %356
    %359 = vset.pattern.permute.xlu0 2
    %360 = vperm.xlu0 %359, %v121
    %v361 = vpop.permute.xlu0 %360
    %363 = vset.pattern.permute.xlu0 2
    %364 = vperm.xlu0 %363, %v122
    %v365 = vpop.permute.xlu0 %364
    %367 = vset.pattern.permute.xlu0 2
    %368 = vperm.xlu0 %367, %v123
    %v369 = vpop.permute.xlu0 %368
    %371 = vset.pattern.permute.xlu0 2
    %372 = vperm.xlu0 %371, %v124
    %v373 = vpop.permute.xlu0 %372
    %375 = vset.pattern.permute.xlu0 2
    %376 = vperm.xlu0 %375, %v125
    %v377 = vpop.permute.xlu0 %376
    %379 = vset.pattern.permute.xlu0 2
    %380 = vperm.xlu0 %379, %v126
    %v381 = vpop.permute.xlu0 %380
    %383 = vset.pattern.permute.xlu0 2
    %384 = vperm.xlu0 %383, %v127
    %v385 = vpop.permute.xlu0 %384
    %387 = vset.pattern.permute.xlu0 2
    %388 = vperm.xlu0 %387, %v128
    %v389 = vpop.permute.xlu0 %388
    %391 = vset.pattern.permute.xlu0 2
    %392 = vperm.xlu0 %391, %v129
    %v393 = vpop.permute.xlu0 %392
    %395 = vset.pattern.permute.xlu0 2
    %396 = vperm.xlu0 %395, %v130
    %v397 = vpop.permute.xlu0 %396
    %399 = vset.pattern.permute.xlu0 2
    %400 = vperm.xlu0 %399, %v131
    %v401 = vpop.permute.xlu0 %400
    %403 = vset.pattern.permute.xlu0 2
    %404 = vperm.xlu0 %403, %v132
    %v405 = vpop.permute.xlu0 %404
    %407 = vset.pattern.permute.xlu0 2
    %408 = vperm.xlu0 %407, %v133
    %v409 = vpop.permute.xlu0 %408
    %v411 = vperm.slane %v346, 0
    %v412 = vmul.f32 %v349, %v411
    %v413 = vmul.f32 %v353, %v411
    %v414 = vmul.f32 %v357, %v411
    %v415 = vmul.f32 %v361, %v411
    %v416 = vmul.f32 %v365, %v411
    %v417 = vmul.f32 %v369, %v411
    %v418 = vmul.f32 %v373, %v411
    %v419 = vmul.f32 %v377, %v411
    %v420 = vmul.f32 %v381, %v411
    %v421 = vmul.f32 %v385, %v411
    %v422 = vmul.f32 %v389, %v411
    %v423 = vmul.f32 %v393, %v411
    %v424 = vmul.f32 %v397, %v411
    %v425 = vmul.f32 %v401, %v411
    %v426 = vmul.f32 %v405, %v411
    %v427 = vmul.f32 %v409, %v411
    %v428 = vadd.f32 %v330, %v412
    %v429 = vadd.f32 %v331, %v413
    %v430 = vadd.f32 %v332, %v414
    %v431 = vadd.f32 %v333, %v415
    %v432 = vadd.f32 %v334, %v416
    %v433 = vadd.f32 %v335, %v417
    %v434 = vadd.f32 %v336, %v418
    %v435 = vadd.f32 %v337, %v419
    %v436 = vadd.f32 %v338, %v420
    %v437 = vadd.f32 %v339, %v421
    %v438 = vadd.f32 %v340, %v422
    %v439 = vadd.f32 %v341, %v423
    %v440 = vadd.f32 %v342, %v424
    %v441 = vadd.f32 %v343, %v425
    %v442 = vadd.f32 %v344, %v426
    %v443 = vadd.f32 %v345, %v427
    %v444 = vld [vmem:[%s0 + $0x3] sm:$0x1]
    %445 = vset.pattern.permute.xlu0 3
    %446 = vperm.xlu0 %445, %v118
    %v447 = vpop.permute.xlu0 %446
    %449 = vset.pattern.permute.xlu0 3
    %450 = vperm.xlu0 %449, %v119
    %v451 = vpop.permute.xlu0 %450
    %453 = vset.pattern.permute.xlu0 3
    %454 = vperm.xlu0 %453, %v120
    %v455 = vpop.permute.xlu0 %454
    %457 = vset.pattern.permute.xlu0 3
    %458 = vperm.xlu0 %457, %v121
    %v459 = vpop.permute.xlu0 %458
    %461 = vset.pattern.permute.xlu0 3
    %462 = vperm.xlu0 %461, %v122
    %v463 = vpop.permute.xlu0 %462
    %465 = vset.pattern.permute.xlu0 3
    %466 = vperm.xlu0 %465, %v123
    %v467 = vpop.permute.xlu0 %466
    %469 = vset.pattern.permute.xlu0 3
    %470 = vperm.xlu0 %469, %v124
    %v471 = vpop.permute.xlu0 %470
    %473 = vset.pattern.permute.xlu0 3
    %474 = vperm.xlu0 %473, %v125
    %v475 = vpop.permute.xlu0 %474
    %477 = vset.pattern.permute.xlu0 3
    %478 = vperm.xlu0 %477, %v126
    %v479 = vpop.permute.xlu0 %478
    %481 = vset.pattern.permute.xlu0 3
    %482 = vperm.xlu0 %481, %v127
    %v483 = vpop.permute.xlu0 %482
    %485 = vset.pattern.permute.xlu0 3
    %486 = vperm.xlu0 %485, %v128
    %v487 = vpop.permute.xlu0 %486
    %489 = vset.pattern.permute.xlu0 3
    %490 = vperm.xlu0 %489, %v129
    %v491 = vpop.permute.xlu0 %490
    %493 = vset.pattern.permute.xlu0 3
    %494 = vperm.xlu0 %493, %v130
    %v495 = vpop.permute.xlu0 %494
    %497 = vset.pattern.permute.xlu0 3
    %498 = vperm.xlu0 %497, %v131
    %v499 = vpop.permute.xlu0 %498
    %501 = vset.pattern.permute.xlu0 3
    %502 = vperm.xlu0 %501, %v132
    %v503 = vpop.permute.xlu0 %502
    %505 = vset.pattern.permute.xlu0 3
    %506 = vperm.xlu0 %505, %v133
    %v507 = vpop.permute.xlu0 %506
    %v509 = vperm.slane %v444, 0
    %v510 = vmul.f32 %v447, %v509
    %v511 = vmul.f32 %v451, %v509
    %v512 = vmul.f32 %v455, %v509
    %v513 = vmul.f32 %v459, %v509
    %v514 = vmul.f32 %v463, %v509
    %v515 = vmul.f32 %v467, %v509
    %v516 = vmul.f32 %v471, %v509
    %v517 = vmul.f32 %v475, %v509
    %v518 = vmul.f32 %v479, %v509
    %v519 = vmul.f32 %v483, %v509
    %v520 = vmul.f32 %v487, %v509
    %v521 = vmul.f32 %v491, %v509
    %v522 = vmul.f32 %v495, %v509
    %v523 = vmul.f32 %v499, %v509
    %v524 = vmul.f32 %v503, %v509
    %v525 = vmul.f32 %v507, %v509
    %v526 = vadd.f32 %v428, %v510
    %v527 = vadd.f32 %v429, %v511
    %v528 = vadd.f32 %v430, %v512
    %v529 = vadd.f32 %v431, %v513
    %v530 = vadd.f32 %v432, %v514
    %v531 = vadd.f32 %v433, %v515
    %v532 = vadd.f32 %v434, %v516
    %v533 = vadd.f32 %v435, %v517
    %v534 = vadd.f32 %v436, %v518
    %v535 = vadd.f32 %v437, %v519
    %v536 = vadd.f32 %v438, %v520
    %v537 = vadd.f32 %v439, %v521
    %v538 = vadd.f32 %v440, %v522
    %v539 = vadd.f32 %v441, %v523
    %v540 = vadd.f32 %v442, %v524
    %v541 = vadd.f32 %v443, %v525
    %v542 = vmax.f32 %v526, 0.0
    %v543 = vmax.f32 %v527, 0.0
    %v544 = vmax.f32 %v528, 0.0
    %v545 = vmax.f32 %v529, 0.0
    %v546 = vmax.f32 %v530, 0.0
    %v547 = vmax.f32 %v531, 0.0
    %v548 = vmax.f32 %v532, 0.0
    %v549 = vmax.f32 %v533, 0.0
    %v550 = vmax.f32 %v534, 0.0
    %v551 = vmax.f32 %v535, 0.0
    %v552 = vmax.f32 %v536, 0.0
    %v553 = vmax.f32 %v537, 0.0
    %v554 = vmax.f32 %v538, 0.0
    %v555 = vmax.f32 %v539, 0.0
    %v556 = vmax.f32 %v540, 0.0
    %v557 = vmax.f32 %v541, 0.0
    %v558 = vld [vmem:[%s3] sm:$0xff]
    %v559 = vld [vmem:[%s3 + $0x8] sm:$0xff]
    %v560 = vld [vmem:[%s3 + $0x10] sm:$0xff]
    %v561 = vld [vmem:[%s3 + $0x18] sm:$0xff]
    %v562 = vld [vmem:[%s3 + $0x20] sm:$0xff]
    %v563 = vld [vmem:[%s3 + $0x28] sm:$0xff]
    %v564 = vld [vmem:[%s3 + $0x30] sm:$0xff]
    %v565 = vld [vmem:[%s3 + $0x38] sm:$0xff]
    %v566 = vld [vmem:[%s3 + $0x40] sm:$0xff]
    %v567 = vld [vmem:[%s3 + $0x48] sm:$0xff]
    %v568 = vld [vmem:[%s3 + $0x50] sm:$0xff]
    %v569 = vld [vmem:[%s3 + $0x58] sm:$0xff]
    %v570 = vld [vmem:[%s3 + $0x60] sm:$0xff]
    %v571 = vld [vmem:[%s3 + $0x68] sm:$0xff]
    %v572 = vld [vmem:[%s3 + $0x70] sm:$0xff]
    %v573 = vld [vmem:[%s3 + $0x78] sm:$0xff]
    %575 = vset.pattern.permute.xlu0 0
    %576 = vperm.xlu0 %575, %v558
    %v577 = vpop.permute.xlu0 %576
    %580 = vset.pattern.permute.xlu0 0
    %581 = vperm.xlu0 %580, %v559
    %v582 = vpop.permute.xlu0 %581
    %585 = vset.pattern.permute.xlu0 0
    %586 = vperm.xlu0 %585, %v560
    %v587 = vpop.permute.xlu0 %586
    %590 = vset.pattern.permute.xlu0 0
    %591 = vperm.xlu0 %590, %v561
    %v592 = vpop.permute.xlu0 %591
    %595 = vset.pattern.permute.xlu0 0
    %596 = vperm.xlu0 %595, %v562
    %v597 = vpop.permute.xlu0 %596
    %600 = vset.pattern.permute.xlu0 0
    %601 = vperm.xlu0 %600, %v563
    %v602 = vpop.permute.xlu0 %601
    %605 = vset.pattern.permute.xlu0 0
    %606 = vperm.xlu0 %605, %v564
    %v607 = vpop.permute.xlu0 %606
    %610 = vset.pattern.permute.xlu0 0
    %611 = vperm.xlu0 %610, %v565
    %v612 = vpop.permute.xlu0 %611
    %615 = vset.pattern.permute.xlu0 0
    %616 = vperm.xlu0 %615, %v566
    %v617 = vpop.permute.xlu0 %616
    %620 = vset.pattern.permute.xlu0 0
    %621 = vperm.xlu0 %620, %v567
    %v622 = vpop.permute.xlu0 %621
    %625 = vset.pattern.permute.xlu0 0
    %626 = vperm.xlu0 %625, %v568
    %v627 = vpop.permute.xlu0 %626
    %630 = vset.pattern.permute.xlu0 0
    %631 = vperm.xlu0 %630, %v569
    %v632 = vpop.permute.xlu0 %631
    %635 = vset.pattern.permute.xlu0 0
    %636 = vperm.xlu0 %635, %v570
    %v637 = vpop.permute.xlu0 %636
    %640 = vset.pattern.permute.xlu0 0
    %641 = vperm.xlu0 %640, %v571
    %v642 = vpop.permute.xlu0 %641
    %645 = vset.pattern.permute.xlu0 0
    %646 = vperm.xlu0 %645, %v572
    %v647 = vpop.permute.xlu0 %646
    %650 = vset.pattern.permute.xlu0 0
    %651 = vperm.xlu0 %650, %v573
    %v652 = vpop.permute.xlu0 %651
    %v654 = vmul.f32 %v542, %v577
    %v655 = vmul.f32 %v543, %v582
    %v656 = vmul.f32 %v544, %v587
    %v657 = vmul.f32 %v545, %v592
    %v658 = vmul.f32 %v546, %v597
    %v659 = vmul.f32 %v547, %v602
    %v660 = vmul.f32 %v548, %v607
    %v661 = vmul.f32 %v549, %v612
    %v662 = vmul.f32 %v550, %v617
    %v663 = vmul.f32 %v551, %v622
    %v664 = vmul.f32 %v552, %v627
    %v665 = vmul.f32 %v553, %v632
    %v666 = vmul.f32 %v554, %v637
    %v667 = vmul.f32 %v555, %v642
    %v668 = vmul.f32 %v556, %v647
    %v669 = vmul.f32 %v557, %v652
    %vm670 = vcmask 64512
    %v671 = vsel %vm670, %v654, 0.0
    %v672 = vsel %vm670, %v655, 0.0
    %v673 = vadd.f32 %v671, %v672
    %v674 = vsel %vm670, %v656, 0.0
    %v675 = vadd.f32 %v673, %v674
    %v676 = vsel %vm670, %v657, 0.0
    %v677 = vadd.f32 %v675, %v676
    %v678 = vsel %vm670, %v658, 0.0
    %v679 = vadd.f32 %v677, %v678
    %v680 = vsel %vm670, %v659, 0.0
    %v681 = vadd.f32 %v679, %v680
    %v682 = vsel %vm670, %v660, 0.0
    %v683 = vadd.f32 %v681, %v682
    %v684 = vsel %vm670, %v661, 0.0
    %v685 = vadd.f32 %v683, %v684
    %v686 = vsel %vm670, %v662, 0.0
    %v687 = vadd.f32 %v685, %v686
    %v688 = vsel %vm670, %v663, 0.0
    %v689 = vadd.f32 %v687, %v688
    %v690 = vsel %vm670, %v664, 0.0
    %v691 = vadd.f32 %v689, %v690
    %v692 = vsel %vm670, %v665, 0.0
    %v693 = vadd.f32 %v691, %v692
    %v694 = vsel %vm670, %v666, 0.0
    %v695 = vadd.f32 %v693, %v694
    %v696 = vsel %vm670, %v667, 0.0
    %v697 = vadd.f32 %v695, %v696
    %v698 = vsel %vm670, %v668, 0.0
    %v699 = vadd.f32 %v697, %v698
    %v700 = vsel %vm670, %v669, 0.0
    %v701 = vadd.f32 %v699, %v700
    %v702 = vrot.slane %v701, 4
    %v703 = vadd.f32 %v701, %v702
    %v704 = vrot.slane %v703, 2
    %v705 = vadd.f32 %v703, %v704
    %v706 = vrot.slane %v705, 1
    %v707 = vadd.f32 %v705, %v706
    %s708 = sld [smem:[#allocation2]]
    %v709 = vstv %s708
    %v710 = vadd.f32 %v707, %v709
    %vm711 = vcmask 57344
    %712 = vst.msk [vmem:[#allocation3] sm:$0x1] %vm711, %v710
    // Predicated region
    $region22: #{critic_forward.1} parent=1 // pred_check
      _
    $region23: #{critic_forward.1} parent=1 // pred_check_branch
      %714 = sbr.rel (0) target = $region25
    $region24: #{critic_forward.1} parent=1 // pred_region
      %716 = vsyncadd [#allocation4], 0
      %s718 = sshll.u32 [#allocation3], 4
      %s719 = int_to_ptr.vmem [resolvable:$true] %s718
      %s720 = sshll.u32 %s5, 4
      %s721 = int_to_ptr.hbm [resolvable:$true] %s720
      %723 = dma.vmem_to_hbm [thread:$0]  %s719, 16, %s721, [#allocation4]
    $region25: #{critic_forward.1} parent=1 // pred_fallthru
      _
    // Predicated region
    $region26: #{critic_forward.1} parent=1 // pred_check
      _
    $region27: #{critic_forward.1} parent=1 // pred_check_branch
      %725 = sbr.rel (0) target = $region29
    $region28: #{critic_forward.1} parent=1 // pred_region
      %727 = dma.done [#allocation4], 16
    $region29: #{critic_forward.1} parent=1 // pred_fallthru
      _
    %728 = vsyncpa [#allocation4], 1

</llo_original>
